<compile_context>
chip_gen: v7x
topology: tpu7x:2x2x1
jax: 0.10.0
libtpu: 0.0.40
codegen_flags: <defaults>
</compile_context>

<pallas_src>
import functools

import jax
import jax.numpy as jnp
from jax.experimental import pallas as pl
from jax.experimental.pallas import tpu as pltpu

LAMBD = 0.06
TEMP = 1.0


# ----------------------------------------------------------------------------
# Kernel 1: per-(CAM k, batch b) statistics.  Block = one (C, HW) slab.
#   neg[k,b,c]  = sum_hw(-log_softmax(x/T)) / HW  = log_z - sum(x)/(T*HW)
#   ssum[k,b,c] = sum_hw(x)                         (only k=0 consumed outside)
#   pos[k,b,:]  = softmax(x[y[b], :] / T)           (true-class row only)
# ----------------------------------------------------------------------------
def _cam_stats_kernel(y_ref, x_ref, neg_ref, ssum_ref, pos_ref, *, inv_temp, inv_hw):
    b = pl.program_id(1)

    x = x_ref[...]                                   # (C, HW) f32
    xs = x * inv_temp
    m = jnp.max(xs, axis=-1, keepdims=True)          # (C, 1)
    e = jnp.exp(xs - m)
    s = jnp.sum(e, axis=-1, keepdims=True)           # (C, 1)
    log_z = jnp.log(s) + m                           # (C, 1)
    ssum = jnp.sum(x, axis=-1, keepdims=True)        # (C, 1) raw spatial sum

    neg_ref[...] = log_z - ssum * (inv_temp * inv_hw)
    ssum_ref[...] = ssum

    # Softmax of the true-class row only (dynamic sublane slice, no full divide).
    cls = y_ref[b]
    xr = x_ref[pl.ds(cls, 1), :] * inv_temp          # (1, HW)
    mr = jnp.max(xr, axis=-1, keepdims=True)
    er = jnp.exp(xr - mr)
    sr = jnp.sum(er, axis=-1, keepdims=True)
    pos_ref[...] = er / sr                           # (1, HW)


def cam_stats(cams_kbc_hw, y, temp):
    """cams_kbc_hw: (K, B, C, HW) f32, y: (B,) int32."""
    K, B, C, hw = cams_kbc_hw.shape
    kernel = functools.partial(
        _cam_stats_kernel, inv_temp=1.0 / float(temp), inv_hw=1.0 / float(hw))
    return pl.pallas_call(
        kernel,
        out_shape=(
            jax.ShapeDtypeStruct((K, B, C, 1), jnp.float32),   # neg
            jax.ShapeDtypeStruct((K, B, C, 1), jnp.float32),   # spatial sums
            jax.ShapeDtypeStruct((K, B, 1, hw), jnp.float32),  # pos (true class)
        ),
        grid_spec=pltpu.PrefetchScalarGridSpec(
            num_scalar_prefetch=1,
            grid=(K, B),
            in_specs=[
                pl.BlockSpec((None, None, C, hw), lambda k, b, y_ref: (k, b, 0, 0)),
            ],
            out_specs=(
                pl.BlockSpec((None, None, C, 1), lambda k, b, y_ref: (k, b, 0, 0)),
                pl.BlockSpec((None, None, C, 1), lambda k, b, y_ref: (k, b, 0, 0)),
                pl.BlockSpec((None, None, 1, hw), lambda k, b, y_ref: (k, b, 0, 0)),
            ),
        ),
        compiler_params=pltpu.CompilerParams(
            dimension_semantics=("parallel", "parallel")),
    )(y.astype(jnp.int32), cams_kbc_hw)


# ----------------------------------------------------------------------------
# Kernel 2: reduce to the scalar loss, tiled over the batch axis.
#   per batch b:
#     neg_b = sum_{k,c} neg[k,b,c] * mask[b,c]
#     p_mix = log(clamp(mean_k p_k, 1e-7, 1))
#     kl_b  = sum_k sum_hw p_k * (log p_k - p_mix)
#   loss = lambd / (B*K) * sum_b (neg_b + kl_b)
# ----------------------------------------------------------------------------
def _loss_kernel(negs_ref, mask_ref, ps_ref, out_ref, *, lambd, k, b_total):
    b = pl.program_id(0)

    @pl.when(b == 0)
    def _():
        out_ref[...] = jnp.zeros_like(out_ref)

    negs = negs_ref[...]                              # (K, C, 1)
    mask = mask_ref[...]                              # (C, 1)
    neg_part = jnp.sum(negs * mask[None, :, :])

    ps = ps_ref[...]                                  # (K, 1, HW)
    p_mix = jnp.log(jnp.clip(jnp.sum(ps, axis=0, keepdims=True) * (1.0 / k),
                             1e-7, 1.0))              # (1, 1, HW)
    log_p = jnp.where(ps > 0, jnp.log(ps), 0.0)
    kl_part = jnp.sum(jnp.where(ps > 0, ps * (log_p - p_mix), 0.0))

    out_ref[...] = out_ref[...] + (neg_part + kl_part)

    @pl.when(b == pl.num_programs(0) - 1)
    def _():
        out_ref[...] = out_ref[...] * (lambd / (b_total * k))


def attention_consistency(c, ci_list, y, lambd=LAMBD, temp=TEMP):
    """Forward pass of AttentionConsistency (segmentation_masks=None branch)."""
    B, C, H, W = c.shape
    hw = H * W
    K = 1 + len(ci_list)

    cams = jnp.stack([c] + list(ci_list), axis=0).astype(jnp.float32)
    cams = cams.reshape(K, B, C, hw)

    neg, ssum, pos = cam_stats(cams, y, temp)
    ssum0 = ssum[0, :, :, 0]                          # (B, C) clean CAM spatial sum

    # top-3 non-true classes of the clean CAM's spatial sum (control/glue logic)
    c1 = ssum0.at[jnp.arange(B), y].set(-jnp.inf)
    topk_ind = jax.lax.top_k(c1, 3)[1]
    neg_mask = jnp.zeros((B, C), jnp.float32).at[
        jnp.arange(B)[:, None], topk_ind].set(1.0)
    neg_mask = neg_mask.reshape(B, C, 1)

    kernel = functools.partial(
        _loss_kernel, lambd=float(lambd), k=float(K), b_total=float(B))
    out = pl.pallas_call(
        kernel,
        out_shape=jax.ShapeDtypeStruct((1, 1), jnp.float32),
        grid_spec=pltpu.PrefetchScalarGridSpec(
            num_scalar_prefetch=0,
            grid=(B,),
            in_specs=[
                pl.BlockSpec((K, None, C, 1), lambda b: (0, b, 0, 0)),    # neg
                pl.BlockSpec((None, C, 1), lambda b: (b, 0, 0)),          # mask
                pl.BlockSpec((K, None, 1, hw), lambda b: (0, b, 0, 0)),   # pos
            ],
            out_specs=pl.BlockSpec((1, 1), lambda b: (0, 0)),
        ),
        compiler_params=pltpu.CompilerParams(dimension_semantics=("arbitrary",)),
    )(neg, neg_mask, pos)
    return out[0, 0]


# ----------------------------------------------------------------------------
# Pure-JAX reference (mirrors the PyTorch module) used for a sanity check.
# ----------------------------------------------------------------------------
def reference(c, ci_list, y, lambd=LAMBD, temp=TEMP):
    B, C, H, W = c.shape
    hw = H * W

    def cam_neg(x):
        r = x.reshape(B, C, hw) / temp
        return jnp.sum(-jax.nn.log_softmax(r, axis=2), axis=2) / hw

    def cam_pos(x):
        return jax.nn.softmax(x.reshape(B, C, hw) / temp, axis=2)

    c0 = cam_neg(c)
    c1 = c.sum(axis=(2, 3))
    c1 = c1.at[jnp.arange(B), y].set(-jnp.inf)
    topk_ind = jax.lax.top_k(c1, 3)[1]
    mask = jnp.zeros((B, C)).at[jnp.arange(B)[:, None], topk_ind].set(1.0) > 0.5

    K = 1 + len(ci_list)
    neg_loss = jnp.sum(jnp.where(mask, c0, 0.0)) / B
    for ci in ci_list:
        neg_loss = neg_loss + jnp.sum(jnp.where(mask, cam_neg(ci), 0.0)) / B
    neg_loss = neg_loss / K

    def select_true(p):
        return p[jnp.arange(B), y, :]

    p0 = select_true(cam_pos(c))
    pis = [select_true(cam_pos(ci)) for ci in ci_list]
    p_mix = p0
    for pi in pis:
        p_mix = p_mix + pi
    p_mix = jnp.log(jnp.clip(p_mix / K, 1e-7, 1.0))

    def kl(inp, tgt):
        return jnp.sum(tgt * (jnp.log(tgt) - inp)) / B

    pos_loss = kl(p_mix, p0)
    for pi in pis:
        pos_loss = pos_loss + kl(p_mix, pi)
    pos_loss = pos_loss / K
    return lambd * (pos_loss + neg_loss)


if __name__ == "__main__":
    key = jax.random.PRNGKey(0)
    B, C, H, W = 2, 8, 16, 16          # (batch, num_classes, H, W)
    n_aug = 2                          # number of augmented CAMs

    k1, k2, k3, _ = jax.random.split(key, 4)
    c = jax.random.normal(k1, (B, C, H, W), dtype=jnp.float32)
    ci_list = [jax.random.normal(k, (B, C, H, W), dtype=jnp.float32)
               for k in jax.random.split(k2, n_aug)]
    y = jax.random.randint(k3, (B,), 0, C, dtype=jnp.int32)

    loss = attention_consistency(c, ci_list, y)
    loss = jax.block_until_ready(loss)

    ref = jax.block_until_ready(reference(c, ci_list, y))
    assert jnp.allclose(loss, ref, rtol=1e-4, atol=1e-5), (loss, ref)

    print("KERNEL_OK")
</pallas_src>

<mosaic_0001>
module attributes {stable_mosaic.version = 11 : i64} {
  func.func @_cam_stats_kernel(%arg0: i32, %arg1: i32, %arg2: memref<2xi32, #tpu.memory_space<smem>>, %arg3: memref<1x1x8x256xf32, #tpu.memory_space<vmem>>, %arg4: memref<1x1x8x1xf32, #tpu.memory_space<vmem>>, %arg5: memref<1x1x8x1xf32, #tpu.memory_space<vmem>>, %arg6: memref<1x1x1x256xf32, #tpu.memory_space<vmem>>) attributes {dimension_semantics = [#tpu.dimension_semantics<parallel>, #tpu.dimension_semantics<parallel>], iteration_bounds = array<i64: 3, 2>, scalar_prefetch = 1 : i64, scratch_operands = 0 : i64, tpu.core_type = #tpu.core_type<tc>, window_params = [{transform_indices = @transform_0, window_bounds = array<i64: 1, 1, 8, 256>}, {transform_indices = @transform_1, window_bounds = array<i64: 1, 1, 8, 1>}, {transform_indices = @transform_2, window_bounds = array<i64: 1, 1, 8, 1>}, {transform_indices = @transform_3, window_bounds = array<i64: 1, 1, 1, 256>}]} {
    %c0 = arith.constant 0 : index
    %c0_0 = arith.constant 0 : index
    %c0_1 = arith.constant 0 : index
    %c0_2 = arith.constant 0 : index
    %0 = vector.load %arg3[%c0, %c0_0, %c0_1, %c0_2] : memref<1x1x8x256xf32, #tpu.memory_space<vmem>>, vector<1x1x8x256xf32>
    %1 = vector.shape_cast %0 : vector<1x1x8x256xf32> to vector<8x256xf32>
    %cst = arith.constant 1.000000e+00 : f32
    %2 = vector.broadcast %cst : f32 to vector<8x256xf32>
    %3 = arith.mulf %1, %2 : vector<8x256xf32>
    %cst_3 = arith.constant dense<0xFF800000> : vector<8xf32>
    %4 = vector.multi_reduction <maximumf>, %3, %cst_3 [1] : vector<8x256xf32> to vector<8xf32>
    %5 = vector.shape_cast %4 : vector<8xf32> to vector<8x1xf32>
    %6 = vector.broadcast %5 : vector<8x1xf32> to vector<8x256xf32>
    %7 = arith.subf %3, %6 : vector<8x256xf32>
    %8 = math.exp %7 : vector<8x256xf32>
    %cst_4 = arith.constant dense<0.000000e+00> : vector<8xf32>
    %9 = vector.multi_reduction <add>, %8, %cst_4 [1] : vector<8x256xf32> to vector<8xf32>
    %10 = vector.shape_cast %9 : vector<8xf32> to vector<8x1xf32>
    %11 = math.log %10 : vector<8x1xf32>
    %12 = arith.addf %11, %5 : vector<8x1xf32>
    %cst_5 = arith.constant dense<0.000000e+00> : vector<8xf32>
    %13 = vector.multi_reduction <add>, %1, %cst_5 [1] : vector<8x256xf32> to vector<8xf32>
    %14 = vector.shape_cast %13 : vector<8xf32> to vector<8x1xf32>
    %cst_6 = arith.constant 3.906250e-03 : f32
    %15 = vector.broadcast %cst_6 : f32 to vector<8x1xf32>
    %16 = arith.mulf %14, %15 : vector<8x1xf32>
    %17 = arith.subf %12, %16 : vector<8x1xf32>
    %c0_7 = arith.constant 0 : index
    %c0_8 = arith.constant 0 : index
    %c0_9 = arith.constant 0 : index
    %c0_10 = arith.constant 0 : index
    %18 = vector.load %arg4[%c0_7, %c0_8, %c0_9, %c0_10] : memref<1x1x8x1xf32, #tpu.memory_space<vmem>>, vector<1x1x8x1xf32>
    %19 = vector.shape_cast %18 : vector<1x1x8x1xf32> to vector<8x1xf32>
    %20 = vector.shape_cast %17 : vector<8x1xf32> to vector<1x1x8x1xf32>
    tpu.vector_store %arg4[%c0_7, %c0_8, %c0_9, %c0_10], %20 {strides = array<i32>} : memref<1x1x8x1xf32, #tpu.memory_space<vmem>>, vector<1x1x8x1xf32>,
    %c0_11 = arith.constant 0 : index
    %c0_12 = arith.constant 0 : index
    %c0_13 = arith.constant 0 : index
    %c0_14 = arith.constant 0 : index
    %21 = vector.load %arg5[%c0_11, %c0_12, %c0_13, %c0_14] : memref<1x1x8x1xf32, #tpu.memory_space<vmem>>, vector<1x1x8x1xf32>
    %22 = vector.shape_cast %21 : vector<1x1x8x1xf32> to vector<8x1xf32>
    %23 = vector.shape_cast %14 : vector<8x1xf32> to vector<1x1x8x1xf32>
    tpu.vector_store %arg5[%c0_11, %c0_12, %c0_13, %c0_14], %23 {strides = array<i32>} : memref<1x1x8x1xf32, #tpu.memory_space<vmem>>, vector<1x1x8x1xf32>,
    %24 = arith.index_cast %arg1 : i32 to index
    %25 = memref.load %arg2[%24] : memref<2xi32, #tpu.memory_space<smem>>
    %c0_15 = arith.constant 0 : index
    %c0_16 = arith.constant 0 : index
    %26 = arith.index_cast %25 : i32 to index
    %c0_17 = arith.constant 0 : index
    %27 = vector.load %arg3[%c0_15, %c0_16, %26, %c0_17] : memref<1x1x8x256xf32, #tpu.memory_space<vmem>>, vector<1x1x1x256xf32>
    %28 = vector.shape_cast %27 : vector<1x1x1x256xf32> to vector<1x256xf32>
    %cst_18 = arith.constant 1.000000e+00 : f32
    %29 = vector.broadcast %cst_18 : f32 to vector<1x256xf32>
    %30 = arith.mulf %28, %29 : vector<1x256xf32>
    %cst_19 = arith.constant dense<0xFF800000> : vector<1xf32>
    %31 = vector.multi_reduction <maximumf>, %30, %cst_19 [1] : vector<1x256xf32> to vector<1xf32>
    %32 = vector.shape_cast %31 : vector<1xf32> to vector<1x1xf32>
    %33 = vector.broadcast %32 : vector<1x1xf32> to vector<1x256xf32>
    %34 = arith.subf %30, %33 : vector<1x256xf32>
    %35 = math.exp %34 : vector<1x256xf32>
    %cst_20 = arith.constant dense<0.000000e+00> : vector<1xf32>
    %36 = vector.multi_reduction <add>, %35, %cst_20 [1] : vector<1x256xf32> to vector<1xf32>
    %37 = vector.shape_cast %36 : vector<1xf32> to vector<1x1xf32>
    %38 = vector.broadcast %37 : vector<1x1xf32> to vector<1x256xf32>
    %39 = arith.divf %35, %38 : vector<1x256xf32>
    %c0_21 = arith.constant 0 : index
    %c0_22 = arith.constant 0 : index
    %c0_23 = arith.constant 0 : index
    %c0_24 = arith.constant 0 : index
    %40 = vector.load %arg6[%c0_21, %c0_22, %c0_23, %c0_24] : memref<1x1x1x256xf32, #tpu.memory_space<vmem>>, vector<1x1x1x256xf32>
    %41 = vector.shape_cast %40 : vector<1x1x1x256xf32> to vector<1x256xf32>
    %42 = vector.shape_cast %39 : vector<1x256xf32> to vector<1x1x1x256xf32>
    tpu.vector_store %arg6[%c0_21, %c0_22, %c0_23, %c0_24], %42 {strides = array<i32>} : memref<1x1x1x256xf32, #tpu.memory_space<vmem>>, vector<1x1x1x256xf32>,
    return
  }
  func.func @transform_0(%arg0: i32, %arg1: i32, %arg2: memref<2xi32, #tpu.memory_space<smem>>) -> (i32, i32, i32, i32) {
    %c0_i32 = arith.constant 0 : i32
    %c0_i32_0 = arith.constant 0 : i32
    %c0_i32_1 = arith.constant 0 : i32
    return %arg0, %arg1, %c0_i32, %c0_i32_0 : i32, i32, i32, i32
  }
  func.func @transform_1(%arg0: i32, %arg1: i32, %arg2: memref<2xi32, #tpu.memory_space<smem>>) -> (i32, i32, i32, i32) {
    %c0_i32 = arith.constant 0 : i32
    %c0_i32_0 = arith.constant 0 : i32
    %c0_i32_1 = arith.constant 0 : i32
    return %arg0, %arg1, %c0_i32, %c0_i32_0 : i32, i32, i32, i32
  }
  func.func @transform_2(%arg0: i32, %arg1: i32, %arg2: memref<2xi32, #tpu.memory_space<smem>>) -> (i32, i32, i32, i32) {
    %c0_i32 = arith.constant 0 : i32
    %c0_i32_0 = arith.constant 0 : i32
    %c0_i32_1 = arith.constant 0 : i32
    return %arg0, %arg1, %c0_i32, %c0_i32_0 : i32, i32, i32, i32
  }
  func.func @transform_3(%arg0: i32, %arg1: i32, %arg2: memref<2xi32, #tpu.memory_space<smem>>) -> (i32, i32, i32, i32) {
    %c0_i32 = arith.constant 0 : i32
    %c0_i32_0 = arith.constant 0 : i32
    %c0_i32_1 = arith.constant 0 : i32
    return %arg0, %arg1, %c0_i32, %c0_i32_0 : i32, i32, i32, i32
  }
}

</mosaic_0001>

<llo_original>
// kernel: tpu_custom_call.1
$region0: #{tpu_custom_call.1}
  #allocation0 [shape = 'u32[]', space=smem, size = 0x4, offset = 0x4, fixed_abs, tag = 'smem constant byte address 0x4 - core index']
  #allocation1 [shape = 'u32[144,128]{1,0:T(1,128)}', space=vmem, size = 0x12000, scoped, tag = 'internal scratch']
  #allocation2 [shape = 's32[1]{0}', space=sflag, size = 0x4, scoped, tag = 'scoped memory for tpu_custom_call.1']
  #allocation3 [shape = 'u8[512]{0}', space=smem, size = 0x200, scoped, tag = 'prefetched SMEM operand 0']
  %s0 = inlined_call_operand.hbm [shape: s32[2], index: 0, kind: input, shape index: {}]
  %s1 = inlined_call_operand.hbm [shape: f32[3,2,8,256], index: 1, kind: input, shape index: {}]
  %s2 = inlined_call_operand.vmem [shape: f32[3,2,8,1], index: 2, kind: output, shape index: {0}]
  %s3 = inlined_call_operand.vmem [shape: f32[3,2,8,1], index: 3, kind: output, shape index: {1}]
  %s4 = inlined_call_operand.hbm [shape: f32[3,2,1,256], index: 4, kind: output, shape index: {2}]
  %5 = xla_tuple %s2, %s3, %s4
  %s6 = sld [smem:[#allocation0]]
  $region57: #{tpu_custom_call.1} parent=0
    _
  %s8 = ssub.s32 1, %s6
  %s9 = scalar_select 0, %s8, %s6
  %11 = dma.hbm_to_smem %s0, 16, [#allocation3], [#allocation2]
  %12 = dma.done [#allocation2], 16
  %13 = sfence
  $region1: #{tpu_custom_call.1} parent=0
    #allocation4 [shape = 'u8[16384]{0}', space=vmem, size = 0x4000, scoped, tag = 'input window, operand 1']
    #allocation5 [shape = 's32[2]{0}', space=sflag, size = 0x8, scoped, tag = 'scoped memory for tpu_custom_call.1']
    #allocation6 [shape = 's32[2]{0}', space=sflag, size = 0x8, scoped, tag = 'scoped memory for tpu_custom_call.1']
    #allocation7 [shape = 'u8[2048]{0}', space=vmem, size = 0x800, scoped, tag = 'output window, operand 2']
    %14 = vsyncpa [#allocation5], 0
    %s15 = scalar_lea.sflag [#allocation5], 1
    %16 = vsyncpa %s15, 0
    %17 = vsyncpa [#allocation6], 0
    %s18 = scalar_lea.sflag [#allocation6], 1
    %19 = vsyncpa %s18, 0
    loop: start=0, step=1, limit=8
    $region2: #{tpu_custom_call.1} parent=1 // loop_pre_header
      _
    $region3: #{tpu_custom_call.1} parent=1 // loop_header
      %s21 = sphi 0, %s25
      %p22 = scmp.ge.s32.totalorder %s21, 8
      %s28 = sphi 0, %s40
      %s29 = sphi 0, %s36
      %s30 = sphi 0, %s28
      %s31 = sphi 0, %s29
      %s32 = sphi 0, %s30
      %s33 = sphi 0, %s31
      %s45 = sphi 0, %s47
      %s48 = sphi 0, %s45
      %s49 = sphi 0, %s48
      %s65 = sphi 0, %s49
      %s73 = sphi 0, %s75
      %s76 = sphi 0, %s73
      %s77 = sphi 0, %s76
      %s93 = sphi 0, %s77
      %s101 = sphi 0, %s103
      %s104 = sphi 0, %s101
      %s105 = sphi 0, %s104
      %s121 = sphi 0, %s105
      %s129 = sphi 0, %s131
      %s132 = sphi 0, %s129
      %s133 = sphi 0, %s132
      %s149 = sphi 0, %s133
    $region4: #{tpu_custom_call.1} parent=1 // loop_header_branch
      %24 = sbr.rel (%p22) target = $region8
    $region5: #{tpu_custom_call.1} parent=1 // loop_body
      %s26 = ssub.s32 %s21, 1
      %s27 = ssub.s32 %s21, 2
      %s34 = sadd.s32 1, %s29
      %p35 = scmp.ge.s32.totalorder %s34, 2
      %s36 = scalar_select %p35, 0, %s34
      %s37 = sadd.s32 1, %s28
      %s38 = scalar_select %p35, %s37, %s28
      %p39 = scmp.ge.s32.totalorder %s38, 3
      %s40 = scalar_select %p39, 0, %s38
      %s41 = ssub.s32 %s28, %s40
      %s42 = ssub.s32 %s29, %s36
      %s43 = sor.u32 %s41, %s42
      %p44 = scmp.eq.s32.totalorder %s43, 0
      %s46 = sadd.s32 %s45, 1
      %s47 = scalar_select %p44, %s45, %s46
      %p50 = pneg %p44
      %p51 = scmp.eq.s32.totalorder %s21, 5
      %p52 = por %p50, %p51
      %p53 = scmp.ne.s32.totalorder %s45, %s48
      %p54 = scmp.eq.s32.totalorder %s21, 0
      %p55 = por %p53, %p54
      %p56 = scmp.ne.s32.totalorder %s45, %s48
      %p57 = scmp.eq.s32.totalorder %s26, 5
      %p58 = por %p56, %p57
      %p59 = scmp.ne.s32.totalorder %s48, %s49
      %p60 = scmp.eq.s32.totalorder %s26, 0
      %p61 = por %p59, %p60
      %p62 = scmp.ne.s32.totalorder %s48, %s49
      %p63 = scmp.eq.s32.totalorder %s27, 5
      %p64 = por %p62, %p63
      %p66 = scmp.ne.s32.totalorder %s49, %s65
      %p67 = scmp.eq.s32.totalorder %s27, 0
      %p68 = por %p66, %p67
      %s69 = ssub.s32 %s28, %s40
      %s70 = ssub.s32 %s29, %s36
      %s71 = sor.u32 %s69, %s70
      %p72 = scmp.eq.s32.totalorder %s71, 0
      %s74 = sadd.s32 %s73, 1
      %s75 = scalar_select %p72, %s73, %s74
      %p78 = pneg %p72
      %p79 = scmp.eq.s32.totalorder %s21, 5
      %p80 = por %p78, %p79
      %p81 = scmp.ne.s32.totalorder %s73, %s76
      %p82 = scmp.eq.s32.totalorder %s21, 0
      %p83 = por %p81, %p82
      %p84 = scmp.ne.s32.totalorder %s73, %s76
      %p85 = scmp.eq.s32.totalorder %s26, 5
      %p86 = por %p84, %p85
      %p87 = scmp.ne.s32.totalorder %s76, %s77
      %p88 = scmp.eq.s32.totalorder %s26, 0
      %p89 = por %p87, %p88
      %p90 = scmp.ne.s32.totalorder %s76, %s77
      %p91 = scmp.eq.s32.totalorder %s27, 5
      %p92 = por %p90, %p91
      %p94 = scmp.ne.s32.totalorder %s77, %s93
      %p95 = scmp.eq.s32.totalorder %s27, 0
      %p96 = por %p94, %p95
      %s97 = ssub.s32 %s28, %s40
      %s98 = ssub.s32 %s29, %s36
      %s99 = sor.u32 %s97, %s98
      %p100 = scmp.eq.s32.totalorder %s99, 0
      %s102 = sadd.s32 %s101, 1
      %s103 = scalar_select %p100, %s101, %s102
      %p106 = pneg %p100
      %p107 = scmp.eq.s32.totalorder %s21, 5
      %p108 = por %p106, %p107
      %p109 = scmp.ne.s32.totalorder %s101, %s104
      %p110 = scmp.eq.s32.totalorder %s21, 0
      %p111 = por %p109, %p110
      %p112 = scmp.ne.s32.totalorder %s101, %s104
      %p113 = scmp.eq.s32.totalorder %s26, 5
      %p114 = por %p112, %p113
      %p115 = scmp.ne.s32.totalorder %s104, %s105
      %p116 = scmp.eq.s32.totalorder %s26, 0
      %p117 = por %p115, %p116
      %p118 = scmp.ne.s32.totalorder %s104, %s105
      %p119 = scmp.eq.s32.totalorder %s27, 5
      %p120 = por %p118, %p119
      %p122 = scmp.ne.s32.totalorder %s105, %s121
      %p123 = scmp.eq.s32.totalorder %s27, 0
      %p124 = por %p122, %p123
      %s125 = ssub.s32 %s28, %s40
      %s126 = ssub.s32 %s29, %s36
      %s127 = sor.u32 %s125, %s126
      %p128 = scmp.eq.s32.totalorder %s127, 0
      %s130 = sadd.s32 %s129, 1
      %s131 = scalar_select %p128, %s129, %s130
      %p134 = pneg %p128
      %p135 = scmp.eq.s32.totalorder %s21, 5
      %p136 = por %p134, %p135
      %p137 = scmp.ne.s32.totalorder %s129, %s132
      %p138 = scmp.eq.s32.totalorder %s21, 0
      %p139 = por %p137, %p138
      %p140 = scmp.ne.s32.totalorder %s129, %s132
      %p141 = scmp.eq.s32.totalorder %s26, 5
      %p142 = por %p140, %p141
      %p143 = scmp.ne.s32.totalorder %s132, %s133
      %p144 = scmp.eq.s32.totalorder %s26, 0
      %p145 = por %p143, %p144
      %p146 = scmp.ne.s32.totalorder %s132, %s133
      %p147 = scmp.eq.s32.totalorder %s27, 5
      %p148 = por %p146, %p147
      %p150 = scmp.ne.s32.totalorder %s133, %s149
      %p151 = scmp.eq.s32.totalorder %s27, 0
      %p152 = por %p150, %p151
      %p153 = scmp.le.s32.totalorder 1, %s21
      %p154 = scmp.lt.s32.totalorder %s21, 7
      %p155 = pnand %p153, %p154
      %p156 = pneg %p155
      // Predicated region
      $region9: #{tpu_custom_call.1} parent=5 // pred_check
        _
      $region10: #{tpu_custom_call.1} parent=5 // pred_check_branch
        %158 = sbr.rel (%p155) target = $region12
      $region11: #{tpu_custom_call.1} parent=5 // pred_region
        %s159 = ssub.s32 %s21, 1
      $region12: #{tpu_custom_call.1} parent=5 // pred_fallthru
        _
      %p160 = scmp.lt.s32.totalorder %s21, 6
      // Predicated region
      $region13: #{tpu_custom_call.1} parent=5 // pred_check
        %p161 = pneg %p160
      $region14: #{tpu_custom_call.1} parent=5 // pred_check_branch
        %163 = sbr.rel (%p161) target = $region16
      $region15: #{tpu_custom_call.1} parent=5 // pred_region
        // Predicated region
        $region17: #{tpu_custom_call.1} parent=15 // pred_check
          %p164 = pneg %p55
        $region18: #{tpu_custom_call.1} parent=15 // pred_check_branch
          %166 = sbr.rel (%p164) target = $region20
        $region19: #{tpu_custom_call.1} parent=15 // pred_region
          %s167 = sand.u32 %s45, 1
          %s168 = scalar_lea.sflag [#allocation5], %s167
          %s169 = sand.u32 %s45, 1
          %s170 = smul.addr %s169, 16
          %s171 = scalar_lea.vmem [#allocation4], %s170
          %s173 = ssub.s32 256, 256
          %174 = vsyncadd %s168, %s173
          %s175 = smul.addr %s29, 2
          %s176 = smul.addr %s28, 4
          %s177 = sadd.s32 %s175, %s176
          %s178 = smul.addr %s177, 128
          %s179 = scalar_lea.hbm %s1, %s178
          %s181 = sshll.u32 %s171, 4
          %s182 = int_to_ptr.vmem [resolvable:$true] %s181
          %184 = dma.hbm_to_vmem [thread:$0]  %s179, 256, %s182, %s168
        $region20: #{tpu_custom_call.1} parent=15 // pred_fallthru
          _
      $region16: #{tpu_custom_call.1} parent=5 // pred_fallthru
        _
      %p185 = scmp.le.s32.totalorder 1, %s21
      %p186 = scmp.lt.s32.totalorder %s21, 7
      %p187 = pnand %p185, %p186
      %p188 = pneg %p187
      // Predicated region
      $region21: #{tpu_custom_call.1} parent=5 // pred_check
        _
      $region22: #{tpu_custom_call.1} parent=5 // pred_check_branch
        %190 = sbr.rel (%p187) target = $region24
      $region23: #{tpu_custom_call.1} parent=5 // pred_region
        %s191 = ssub.s32 %s21, 1
        %s192 = sand.u32 %s48, 1
        %s193 = scalar_lea.sflag [#allocation5], %s192
        %s194 = sand.u32 %s48, 1
        %s195 = smul.addr %s194, 16
        %s196 = scalar_lea.vmem [#allocation4], %s195
        // Predicated region
        $region25: #{tpu_custom_call.1} parent=23 // pred_check
          %p197 = pneg %p61
        $region26: #{tpu_custom_call.1} parent=23 // pred_check_branch
          %199 = sbr.rel (%p197) target = $region28
        $region27: #{tpu_custom_call.1} parent=23 // pred_region
          %200 = dma.done %s193, 256
        $region28: #{tpu_custom_call.1} parent=23 // pred_fallthru
          _
        %s201 = sand.u32 %s48, 1
        %s202 = scalar_lea.sflag [#allocation5], %s201
        %s203 = sand.u32 %s48, 1
        %s204 = smul.addr %s203, 16
        %s205 = scalar_lea.vmem [#allocation4], %s204
        %p206 = pneg %p61
        %p207 = pneg %p58
        %p208 = pneg %p89
        %p209 = pneg %p86
        %p210 = scmp.lt.s32.totalorder %s30, 2
        %s211 = scalar_select %p210, %s30, 2
        %p212 = scmp.lt.s32.totalorder %s31, 1
        %s213 = scalar_select %p212, %s31, 1
        %s214 = smul.addr %s211, 2
        %s215 = sadd.s32 %s213, %s214
        %s216 = smul.addr %s215, 8
        %s217 = scalar_lea.vmem %s2, %s216
        %p218 = pneg %p117
        %p219 = pneg %p114
        %p220 = scmp.lt.s32.totalorder %s30, 2
        %s221 = scalar_select %p220, %s30, 2
        %p222 = scmp.lt.s32.totalorder %s31, 1
        %s223 = scalar_select %p222, %s31, 1
        %s224 = smul.addr %s221, 2
        %s225 = sadd.s32 %s223, %s224
        %s226 = smul.addr %s225, 8
        %s227 = scalar_lea.vmem %s3, %s226
        %p228 = pneg %p145
        %p229 = pneg %p142
        %s230 = sand.u32 %s132, 1
        %s231 = scalar_lea.sflag [#allocation6], %s230
        %s232 = sand.u32 %s132, 1
        %s233 = smul.addr %s232, 2
        %s234 = scalar_lea.vmem [#allocation7], %s233
        %p235 = scmp.lt.s32.totalorder %s30, 2
        %s236 = scalar_select %p235, %s30, 2
        %p237 = scmp.lt.s32.totalorder %s31, 1
        %s238 = scalar_select %p237, %s31, 1
        %s239 = smul.addr %s236, 2
        %s240 = sadd.s32 %s238, %s239
        %s241 = smul.addr %s240, 8
        %s242 = scalar_lea.vmem %s2, %s241
        %p243 = scmp.lt.s32.totalorder %s30, 2
        %s244 = scalar_select %p243, %s30, 2
        %p245 = scmp.lt.s32.totalorder %s31, 1
        %s246 = scalar_select %p245, %s31, 1
        %s247 = smul.addr %s244, 2
        %s248 = sadd.s32 %s246, %s247
        %s249 = smul.addr %s248, 8
        %s250 = scalar_lea.vmem %s3, %s249
        %v251 = vld [vmem:[%s196] sm:$0xff]
        %v252 = vld [vmem:[%s196 + $0x8] sm:$0xff]
        %v253 = vmax.f32 %v251, %v252
        %254 = vmax.xlane.f32.xlu0 %v253
        %v255 = vpop.xlane.xlu0 %254
        %v256 = vsub.f32 %v251, %v255
        %v257 = vsub.f32 %v252, %v255
        %v258 = vmul.f32 %v256, 1.442695
        %v259 = vpow.pop %v258
        %v260 = vmul.f32 %v257, 1.442695
        %v261 = vpow.pop %v260
        %v262 = vadd.f32 %v259, %v261
        %263 = vadd.xlane.f32.xlu0 %v262
        %v264 = vpop.xlane.xlu0 %263
        %v265 = vlog2.pop %v264
        %v266 = vmul.f32 %v265, 0.6931472
        %v267 = vadd.f32 %v266, %v255
        %v268 = vadd.f32 %v251, %v252
        %269 = vadd.xlane.f32.xlu0 %v268
        %v270 = vpop.xlane.xlu0 %269
        %v271 = vmul.f32 %v270, 0.00390625
        %v272 = vsub.f32 %v267, %v271
        %vm273 = vcmask 7168
        %274 = vst.msk [vmem:[%s242] sm:$0xff] %vm273, %v272
        %275 = vst.msk [vmem:[%s250] sm:$0xff] %vm273, %v270
        %s276 = sld [smem:[#allocation3 + %s31]]
        %s277 = sshra.s32 %s276, 3
        %s278 = sand.u32 %s276, 7
        %s279 = sshra.s32 %s276, 3
        %s280 = sand.u32 %s276, 7
        %s281 = smul.u32 %s277, 2
        %s282 = smul.u32 %s281, 8
        %s283 = sadd.s32 %s282, %s280
        %s284 = scalar_lea.vmem %s196, %s283 [#allocation4]
        %v285 = vld [vmem:[%s284] ss:$8 sm:$0x3]
        %v287 = vlaneseq
        %v288 = vshrl.u32 %v287, 7
        %v289 = vsub.s32 0, %v288
        %v290 = vrot.slane %v285, %v289
        %v291 = vlaneseq
        %v292 = vshrl.u32 %v291, 7
        %v293 = vsub.s32 1, %v292
        %v294 = vrot.slane %v285, %v293
        %vm297 = vcmask 1040384
        %v298 = vsel %vm297, %v290, -inf
        %v299 = vsel %vm297, %v294, -inf
        %v300 = vmax.f32 %v298, %v299
        %301 = vmax.xlane.f32.xlu0 %v300
        %v302 = vpop.xlane.xlu0 %301
        %v304 = vlaneseq
        %v305 = vshrl.u32 %v304, 7
        %v306 = vsub.s32 0, %v305
        %v307 = vrot.slane %v302, %v306
        %v309 = vsub.f32 %v285, %v307
        %v310 = vmul.f32 %v309, 1.442695
        %v311 = vpow.pop %v310
        %v313 = vlaneseq
        %v314 = vshrl.u32 %v313, 7
        %v315 = vsub.s32 0, %v314
        %v316 = vrot.slane %v311, %v315
        %v317 = vlaneseq
        %v318 = vshrl.u32 %v317, 7
        %v319 = vsub.s32 1, %v318
        %v320 = vrot.slane %v311, %v319
        %v323 = vsel %vm297, %v316, 0.0
        %v324 = vsel %vm297, %v320, 0.0
        %v325 = vadd.f32 %v323, %v324
        %326 = vadd.xlane.f32.xlu0 %v325
        %v327 = vpop.xlane.xlu0 %326
        %v329 = vlaneseq
        %v330 = vshrl.u32 %v329, 7
        %v331 = vsub.s32 0, %v330
        %v332 = vrot.slane %v327, %v331
        %v334 = vrcp.pop %v332
        %v335 = vmul.f32 %v311, %v334
        %v336 = vlaneseq
        %vm337 = vcmp.ge.s32.totalorder %v336, 0
        %vm338 = vcmp.lt.s32.totalorder %v336, 256
        %vm339 = vmand %vm337, %vm338
        %340 = vst.msk [vmem:[%s234] sm:$0x3] %vm339, %v335
        %p341 = scmp.lt.s32.totalorder %s30, 2
        %s342 = scalar_select %p341, %s30, 2
        %p343 = scmp.lt.s32.totalorder %s31, 1
        %s344 = scalar_select %p343, %s31, 1
        %s345 = smul.addr %s342, 2
        %s346 = sadd.s32 %s344, %s345
        %s347 = smul.addr %s346, 8
        %s348 = scalar_lea.vmem %s2, %s347
        %p349 = scmp.lt.s32.totalorder %s30, 2
        %s350 = scalar_select %p349, %s30, 2
        %p351 = scmp.lt.s32.totalorder %s31, 1
        %s352 = scalar_select %p351, %s31, 1
        %s353 = smul.addr %s350, 2
        %s354 = sadd.s32 %s352, %s353
        %s355 = smul.addr %s354, 8
        %s356 = scalar_lea.vmem %s3, %s355
        %s357 = sand.u32 %s132, 1
        %s358 = scalar_lea.sflag [#allocation6], %s357
        %s359 = sand.u32 %s132, 1
        %s360 = smul.addr %s359, 2
        %s361 = scalar_lea.vmem [#allocation7], %s360
        // Predicated region
        $region29: #{tpu_custom_call.1} parent=23 // pred_check
          %p362 = pneg %p86
        $region30: #{tpu_custom_call.1} parent=23 // pred_check_branch
          %364 = sbr.rel (%p362) target = $region32
        $region31: #{tpu_custom_call.1} parent=23 // pred_region
          _
        $region32: #{tpu_custom_call.1} parent=23 // pred_fallthru
          _
        // Predicated region
        $region33: #{tpu_custom_call.1} parent=23 // pred_check
          %p365 = pneg %p114
        $region34: #{tpu_custom_call.1} parent=23 // pred_check_branch
          %367 = sbr.rel (%p365) target = $region36
        $region35: #{tpu_custom_call.1} parent=23 // pred_region
          _
        $region36: #{tpu_custom_call.1} parent=23 // pred_fallthru
          _
        // Predicated region
        $region37: #{tpu_custom_call.1} parent=23 // pred_check
          %p368 = pneg %p142
        $region38: #{tpu_custom_call.1} parent=23 // pred_check_branch
          %370 = sbr.rel (%p368) target = $region40
        $region39: #{tpu_custom_call.1} parent=23 // pred_region
          %s372 = ssub.s32 32, 32
          %373 = vsyncadd %s358, %s372
          %s374 = smul.addr %s31, 2
          %s375 = smul.addr %s30, 4
          %s376 = sadd.s32 %s374, %s375
          %s377 = smul.addr %s376, 16
          %s378 = scalar_lea.hbm %s4, %s377
          %s380 = sshll.u32 %s361, 4
          %s381 = int_to_ptr.vmem [resolvable:$true] %s380
          %383 = dma.vmem_to_hbm [thread:$0]  %s381, 32, %s378, %s358
        $region40: #{tpu_custom_call.1} parent=23 // pred_fallthru
          _
      $region24: #{tpu_custom_call.1} parent=5 // pred_fallthru
        _
      %p384 = scmp.le.s32.totalorder 2, %s21
      // Predicated region
      $region41: #{tpu_custom_call.1} parent=5 // pred_check
        %p385 = pneg %p384
      $region42: #{tpu_custom_call.1} parent=5 // pred_check_branch
        %387 = sbr.rel (%p385) target = $region44
      $region43: #{tpu_custom_call.1} parent=5 // pred_region
        %s388 = ssub.s32 %s21, 2
        // Predicated region
        $region45: #{tpu_custom_call.1} parent=43 // pred_check
          %p389 = pneg %p92
        $region46: #{tpu_custom_call.1} parent=43 // pred_check_branch
          %391 = sbr.rel (%p389) target = $region48
        $region47: #{tpu_custom_call.1} parent=43 // pred_region
          %p392 = scmp.lt.s32.totalorder %s32, 2
          %s393 = scalar_select %p392, %s32, 2
          %p394 = scmp.lt.s32.totalorder %s33, 1
          %s395 = scalar_select %p394, %s33, 1
          %s396 = smul.addr %s393, 2
          %s397 = sadd.s32 %s395, %s396
          %s398 = smul.addr %s397, 8
          %s399 = scalar_lea.vmem %s2, %s398
        $region48: #{tpu_custom_call.1} parent=43 // pred_fallthru
          _
        // Predicated region
        $region49: #{tpu_custom_call.1} parent=43 // pred_check
          %p400 = pneg %p120
        $region50: #{tpu_custom_call.1} parent=43 // pred_check_branch
          %402 = sbr.rel (%p400) target = $region52
        $region51: #{tpu_custom_call.1} parent=43 // pred_region
          %p403 = scmp.lt.s32.totalorder %s32, 2
          %s404 = scalar_select %p403, %s32, 2
          %p405 = scmp.lt.s32.totalorder %s33, 1
          %s406 = scalar_select %p405, %s33, 1
          %s407 = smul.addr %s404, 2
          %s408 = sadd.s32 %s406, %s407
          %s409 = smul.addr %s408, 8
          %s410 = scalar_lea.vmem %s3, %s409
        $region52: #{tpu_custom_call.1} parent=43 // pred_fallthru
          _
        // Predicated region
        $region53: #{tpu_custom_call.1} parent=43 // pred_check
          %p411 = pneg %p148
        $region54: #{tpu_custom_call.1} parent=43 // pred_check_branch
          %413 = sbr.rel (%p411) target = $region56
        $region55: #{tpu_custom_call.1} parent=43 // pred_region
          %s414 = sand.u32 %s133, 1
          %s415 = scalar_lea.sflag [#allocation6], %s414
          %s416 = sand.u32 %s133, 1
          %s417 = smul.addr %s416, 2
          %s418 = scalar_lea.vmem [#allocation7], %s417
          %419 = dma.done %s415, 32
        $region56: #{tpu_custom_call.1} parent=43 // pred_fallthru
          _
      $region44: #{tpu_custom_call.1} parent=5 // pred_fallthru
        _
    $region6: #{tpu_custom_call.1} parent=1 // loop_footer
      %s25 = sadd.s32 1, %s21
    $region7: #{tpu_custom_call.1} parent=1 // loop_footer_branch
      %20 = sbr.rel target = $region3
    $region8: #{tpu_custom_call.1} parent=1 // loop_exit
      _
    %420 = vsyncpa [#allocation5], 1
    %s421 = scalar_lea.sflag [#allocation5], 1
    %422 = vsyncpa %s421, 1
    %423 = vsyncpa [#allocation6], 1
    %s424 = scalar_lea.sflag [#allocation6], 1
    %425 = vsyncpa %s424, 1

</llo_original>
